<compile_context>
chip_gen: v5e
topology: v5e:2x2
jax: 0.10.0
libtpu: 0.0.40
codegen_flags: <defaults>
</compile_context>

<pallas_src>
import functools

import jax
import jax.numpy as jnp
from jax import lax
from jax.experimental import pallas as pl
from jax.experimental.pallas import tpu as pltpu

EPS = 1e-5
LANE = 128


def _residual_block_kernel(xf_ref, mask_ref, w1_ref, w2_ref, bn_ref,
                           out_ref, h_ref, *, guard, cpack, m_valid):
    """All refs are lane-dense with lane = x * cpack + c.

    xf_ref : (R, 128)    zero-padded input slab, rows = guard | N*Hp core | guard
    mask_ref: (core, 128) 1.0 at real pixels (valid y row, valid x column, c < C)
    w*_ref : (3, 128, 128) per-ky banded block weights (kx taps + Cin->Cout folded)
    bn_ref : (4, 128)    [g1; bt1; g2; bt2] in the lane pattern
    out_ref: (core, 128) output in the same packed layout
    h_ref  : (R, 128)    VMEM scratch for the conv2 input (with guard rows)
    """
    R, L = xf_ref.shape
    core = out_ref.shape[0]
    inv_m = 1.0 / float(m_valid)

    mask = mask_ref[...]                                   # (core, L)

    def conv3x3(src_ref, w_ref):
        # 3 contiguous row-shifted slices, each feeding one lane-dense
        # (core, 128) @ (128, 128) MXU dot accumulated in f32.
        acc = jnp.zeros((core, L), dtype=jnp.float32)
        for ky in range(3):
            off = guard + ky - 1
            acc = acc + jnp.dot(src_ref[off:off + core, :], w_ref[ky],
                                preferred_element_type=jnp.float32)
        return acc

    def lane_group_allreduce(v):
        # v: (1, L). Sum over the x positions packed on lanes (stride = cpack),
        # broadcasting the per-channel total back to every lane of that channel.
        # Exact f32; log2(L / cpack) XLU roll+add steps.
        s = cpack
        while s < L:
            v = v + pltpu.roll(v, s, 1)
            s *= 2
        return v

    def bn_fold(acc, g, bt):
        # Training-mode batch stats over valid pixels only, folded into a single
        # per-lane scale/shift so normalization is 2 full-size VPU ops.
        am = acc * mask
        mean = lane_group_allreduce(jnp.sum(am, axis=0, keepdims=True)) * inv_m
        ex2 = lane_group_allreduce(jnp.sum(am * am, axis=0, keepdims=True)) * inv_m
        var = ex2 - mean * mean
        scale = g * lax.rsqrt(var + EPS)
        shift = bt - mean * scale
        return scale, shift

    # ---- conv1 (bias dropped: cancels under batch-stat BN) + bn1 + relu ----
    acc1 = conv3x3(xf_ref, w1_ref)
    sc1, sh1 = bn_fold(acc1, bn_ref[0:1, :], bn_ref[1:2, :])
    # Masking both zeroes the pad ring (the zero padding conv2 expects) and
    # discards garbage at non-valid rows / lanes.
    h = jnp.maximum(acc1 * sc1 + sh1, 0.0) * mask

    # ---- stage conv2 input: zero only the guard rows (full-lane stores) ----
    h_ref[0:guard, :] = jnp.zeros((guard, L), dtype=jnp.float32)
    h_ref[guard + core:R, :] = jnp.zeros((R - guard - core, L), dtype=jnp.float32)
    h_ref[guard:guard + core, :] = h

    # ---- conv2 + bn2 + residual + relu ----
    acc2 = conv3x3(h_ref, w2_ref)
    sc2, sh2 = bn_fold(acc2, bn_ref[2:3, :], bn_ref[3:4, :])
    o = acc2 * sc2 + sh2 + xf_ref[guard:guard + core, :]   # residual = interior rows
    out_ref[...] = jnp.maximum(o, 0.0)


def residual_block(x_nchw, params):
    """x_nchw: (N, C, H, W) float32. Returns (N, C, H, W) float32."""
    w1, b1, g1, bt1, w2, b2, g2, bt2 = params
    del b1, b2  # constant per-channel conv bias before training-mode BN cancels exactly

    N, C, H, W = x_nchw.shape
    Hp, Wp = H + 2, W + 2

    # lane packing: lane = x * cpack + c  (x = padded column, c = channel)
    cpack = 1
    while cpack < C:
        cpack *= 2
    assert cpack <= LANE and Wp <= LANE // cpack, (
        "this kernel packs (padded width, channels) onto the 128-lane axis; "
        f"requires (W+2) * next_pow2(C) <= 128, got W={W}, C={C}")
    xpack = LANE // cpack

    core = N * Hp                  # one slab row per (image, padded image row)
    guard = 8                      # >= 1 and sublane (8) aligned
    R = guard + core + guard
    m_valid = N * H * W

    # ---- layout glue in plain JAX: NHWC, spatial zero-pad, pack (x, c) onto
    # ---- the 128 lanes, flatten (n, y) onto rows, add zero guard rows.
    x = jnp.transpose(x_nchw, (0, 2, 3, 1)).astype(jnp.float32)          # (N,H,W,C)
    xpd = jnp.pad(x, ((0, 0), (1, 1), (1, 1), (0, cpack - C)))           # (N,Hp,Wp,cpack)
    xpd = jnp.pad(xpd, ((0, 0), (0, 0), (0, xpack - Wp), (0, 0)))        # (N,Hp,xpack,cpack)
    xflat = jnp.pad(xpd.reshape(core, LANE), ((guard, guard), (0, 0)))   # (R, LANE)

    def wk(w):
        # OIHW (C,C,3,3) -> (3, 128, 128): per ky a banded block matrix applying
        # all three kx taps and the Cin->Cout mixing in one lane->lane matmul.
        # W[ky][xi*cpack+cin, xo*cpack+cout] = w[cout,cin,ky,kx] iff xi = xo+kx-1.
        w = w.astype(jnp.float32)
        mats = []
        for ky in range(3):
            m = jnp.zeros((LANE, LANE), jnp.float32)
            for kx in range(3):
                tap = jnp.pad(w[:, :, ky, kx].T,
                              ((0, cpack - C), (0, cpack - C)))          # (cin,cout)
                m = m + jnp.kron(jnp.eye(xpack, k=1 - kx, dtype=jnp.float32), tap)
            mats.append(m)
        return jnp.stack(mats)

    def vec(p):   # per-channel vector -> lane pattern (x * cpack + c)
        return jnp.tile(jnp.pad(p.astype(jnp.float32), (0, cpack - C)), xpack)

    bn = jnp.stack([vec(g1), vec(bt1), vec(g2), vec(bt2)])               # (4, LANE)

    # validity mask: 1.0 where the slab position is a real pixel
    yy = jnp.arange(Hp)
    row_valid = jnp.tile(((yy >= 1) & (yy <= H)).astype(jnp.float32), N)     # (core,)
    xx = jnp.arange(xpack)
    cc = jnp.arange(cpack)
    lane_valid = jnp.kron(((xx >= 1) & (xx <= W)).astype(jnp.float32),
                          (cc < C).astype(jnp.float32))                      # (LANE,)
    mask = row_valid[:, None] * lane_valid[None, :]                          # (core, LANE)

    kernel = functools.partial(_residual_block_kernel,
                               guard=guard, cpack=cpack, m_valid=m_valid)

    # Single VMEM-resident block (total footprint < 0.5 MB at these shapes).
    # Scaling to large N/H/W would require a gridded two-pass structure so the
    # BN statistics stay global across tiles (per-channel sum/sumsq accumulated
    # over an "arbitrary" reduction axis, then a normalize+conv2 pass).
    out_flat = pl.pallas_call(
        kernel,
        out_shape=jax.ShapeDtypeStruct((core, LANE), jnp.float32),
        in_specs=[pl.BlockSpec(memory_space=pltpu.MemorySpace.VMEM)] * 5,
        out_specs=pl.BlockSpec(memory_space=pltpu.MemorySpace.VMEM),
        scratch_shapes=[pltpu.VMEM((R, LANE), jnp.float32)],
    )(xflat, mask, wk(w1), wk(w2), bn)

    out = out_flat.reshape(N, Hp, xpack, cpack)[:, 1:H + 1, 1:W + 1, :C]
    return jnp.transpose(out, (0, 3, 1, 2))


def reference(x_nchw, params):
    """Pure-JAX reference matching the PyTorch training-mode forward."""
    w1, b1, g1, bt1, w2, b2, g2, bt2 = params

    def conv(x, w, b):
        y = lax.conv_general_dilated(
            x, w, window_strides=(1, 1), padding=((1, 1), (1, 1)),
            dimension_numbers=('NCHW', 'OIHW', 'NCHW'))
        return y + b[None, :, None, None]

    def bn(x, g, bt):
        mean = jnp.mean(x, axis=(0, 2, 3), keepdims=True)
        var = jnp.mean((x - mean) ** 2, axis=(0, 2, 3), keepdims=True)
        return ((x - mean) * lax.rsqrt(var + EPS)
                * g[None, :, None, None] + bt[None, :, None, None])

    out = jax.nn.relu(bn(conv(x_nchw, w1, b1), g1, bt1))
    out = bn(conv(out, w2, b2), g2, bt2)
    return jax.nn.relu(out + x_nchw)


def make_params(key, C):
    ks = jax.random.split(key, 8)
    w1 = 0.1 * jax.random.normal(ks[0], (C, C, 3, 3), jnp.float32)   # OIHW
    b1 = 0.05 * jax.random.normal(ks[1], (C,), jnp.float32)
    g1 = 1.0 + 0.1 * jax.random.normal(ks[2], (C,), jnp.float32)
    bt1 = 0.1 * jax.random.normal(ks[3], (C,), jnp.float32)
    w2 = 0.1 * jax.random.normal(ks[4], (C, C, 3, 3), jnp.float32)
    b2 = 0.05 * jax.random.normal(ks[5], (C,), jnp.float32)
    g2 = 1.0 + 0.1 * jax.random.normal(ks[6], (C,), jnp.float32)
    bt2 = 0.1 * jax.random.normal(ks[7], (C,), jnp.float32)
    return (w1, b1, g1, bt1, w2, b2, g2, bt2)


if __name__ == "__main__":
    key = jax.random.PRNGKey(0)
    kx, kp = jax.random.split(key)

    N, C, H, W = 2, 4, 16, 16
    x = jax.random.normal(kx, (N, C, H, W), jnp.float32)
    params = make_params(kp, C)

    out = jax.block_until_ready(residual_block(x, params))
    ref = jax.block_until_ready(reference(x, params))

    assert out.shape == (N, C, H, W), out.shape
    assert jnp.allclose(out, ref, atol=1e-4, rtol=1e-4), \
        f"max abs diff {float(jnp.max(jnp.abs(out - ref)))}"
    # TODO(synk): BatchNorm running_mean/running_var updates are stateless side
    # effects of PyTorch training mode and are not reproduced (they do not
    # affect the forward output).
    print("KERNEL_OK")
</pallas_src>

<mosaic_0001>
module attributes {stable_mosaic.version = 11 : i64} {
  func.func @_residual_block_kernel(%arg0: memref<52x128xf32, #tpu.memory_space<vmem>>, %arg1: memref<36x128xf32, #tpu.memory_space<vmem>>, %arg2: memref<3x128x128xf32, #tpu.memory_space<vmem>>, %arg3: memref<3x128x128xf32, #tpu.memory_space<vmem>>, %arg4: memref<4x128xf32, #tpu.memory_space<vmem>>, %arg5: memref<36x128xf32, #tpu.memory_space<vmem>>, %arg6: memref<52x128xf32, #tpu.memory_space<vmem>>) attributes {dimension_semantics = [], scalar_prefetch = 0 : i64, scratch_operands = 1 : i64, tpu.core_type = #tpu.core_type<tc>} {
    %c0 = arith.constant 0 : index
    %c0_0 = arith.constant 0 : index
    %0 = vector.load %arg1[%c0, %c0_0] : memref<36x128xf32, #tpu.memory_space<vmem>>, vector<36x128xf32>
    %cst = arith.constant 0.000000e+00 : f32
    %1 = vector.broadcast %cst : f32 to vector<36x128xf32>
    %c7 = arith.constant 7 : index
    %c0_1 = arith.constant 0 : index
    %2 = vector.load %arg0[%c7, %c0_1] : memref<52x128xf32, #tpu.memory_space<vmem>>, vector<36x128xf32>
    %c0_2 = arith.constant 0 : index
    %c0_3 = arith.constant 0 : index
    %c0_4 = arith.constant 0 : index
    %3 = vector.load %arg2[%c0_2, %c0_3, %c0_4] : memref<3x128x128xf32, #tpu.memory_space<vmem>>, vector<1x128x128xf32>
    %4 = vector.shape_cast %3 : vector<1x128x128xf32> to vector<128x128xf32>
    %cst_5 = arith.constant dense<0.000000e+00> : vector<36x128xf32>
    %5 = tpu.matmul %2, %4, %cst_5 {dimension_numbers = #tpu.dot_dimension_numbers<[1], [0], [0], [1], [0, 0, 1, 1], [], []>} : vector<36x128xf32>, vector<128x128xf32>, vector<36x128xf32> -> vector<36x128xf32>
    %6 = arith.addf %1, %5 : vector<36x128xf32>
    %c8 = arith.constant 8 : index
    %c0_6 = arith.constant 0 : index
    %7 = vector.load %arg0[%c8, %c0_6] : memref<52x128xf32, #tpu.memory_space<vmem>>, vector<36x128xf32>
    %c1 = arith.constant 1 : index
    %c0_7 = arith.constant 0 : index
    %c0_8 = arith.constant 0 : index
    %8 = vector.load %arg2[%c1, %c0_7, %c0_8] : memref<3x128x128xf32, #tpu.memory_space<vmem>>, vector<1x128x128xf32>
    %9 = vector.shape_cast %8 : vector<1x128x128xf32> to vector<128x128xf32>
    %cst_9 = arith.constant dense<0.000000e+00> : vector<36x128xf32>
    %10 = tpu.matmul %7, %9, %cst_9 {dimension_numbers = #tpu.dot_dimension_numbers<[1], [0], [0], [1], [0, 0, 1, 1], [], []>} : vector<36x128xf32>, vector<128x128xf32>, vector<36x128xf32> -> vector<36x128xf32>
    %11 = arith.addf %6, %10 : vector<36x128xf32>
    %c9 = arith.constant 9 : index
    %c0_10 = arith.constant 0 : index
    %12 = vector.load %arg0[%c9, %c0_10] : memref<52x128xf32, #tpu.memory_space<vmem>>, vector<36x128xf32>
    %c2 = arith.constant 2 : index
    %c0_11 = arith.constant 0 : index
    %c0_12 = arith.constant 0 : index
    %13 = vector.load %arg2[%c2, %c0_11, %c0_12] : memref<3x128x128xf32, #tpu.memory_space<vmem>>, vector<1x128x128xf32>
    %14 = vector.shape_cast %13 : vector<1x128x128xf32> to vector<128x128xf32>
    %cst_13 = arith.constant dense<0.000000e+00> : vector<36x128xf32>
    %15 = tpu.matmul %12, %14, %cst_13 {dimension_numbers = #tpu.dot_dimension_numbers<[1], [0], [0], [1], [0, 0, 1, 1], [], []>} : vector<36x128xf32>, vector<128x128xf32>, vector<36x128xf32> -> vector<36x128xf32>
    %16 = arith.addf %11, %15 : vector<36x128xf32>
    %c0_14 = arith.constant 0 : index
    %c0_15 = arith.constant 0 : index
    %17 = vector.load %arg4[%c0_14, %c0_15] : memref<4x128xf32, #tpu.memory_space<vmem>>, vector<1x128xf32>
    %c1_16 = arith.constant 1 : index
    %c0_17 = arith.constant 0 : index
    %18 = vector.load %arg4[%c1_16, %c0_17] : memref<4x128xf32, #tpu.memory_space<vmem>>, vector<1x128xf32>
    %19 = arith.mulf %16, %0 : vector<36x128xf32>
    %cst_18 = arith.constant dense<0.000000e+00> : vector<128xf32>
    %20 = vector.multi_reduction <add>, %19, %cst_18 [0] : vector<36x128xf32> to vector<128xf32>
    %21 = vector.shape_cast %20 : vector<128xf32> to vector<1x128xf32>
    %c4_i32 = arith.constant 4 : i32
    %22 = tpu.dynamic_rotate %21 by %c4_i32 dim 1 : vector<1x128xf32>, i32 -> vector<1x128xf32>
    %23 = arith.addf %21, %22 : vector<1x128xf32>
    %c8_i32 = arith.constant 8 : i32
    %24 = tpu.dynamic_rotate %23 by %c8_i32 dim 1 : vector<1x128xf32>, i32 -> vector<1x128xf32>
    %25 = arith.addf %23, %24 : vector<1x128xf32>
    %c16_i32 = arith.constant 16 : i32
    %26 = tpu.dynamic_rotate %25 by %c16_i32 dim 1 : vector<1x128xf32>, i32 -> vector<1x128xf32>
    %27 = arith.addf %25, %26 : vector<1x128xf32>
    %c32_i32 = arith.constant 32 : i32
    %28 = tpu.dynamic_rotate %27 by %c32_i32 dim 1 : vector<1x128xf32>, i32 -> vector<1x128xf32>
    %29 = arith.addf %27, %28 : vector<1x128xf32>
    %c64_i32 = arith.constant 64 : i32
    %30 = tpu.dynamic_rotate %29 by %c64_i32 dim 1 : vector<1x128xf32>, i32 -> vector<1x128xf32>
    %31 = arith.addf %29, %30 : vector<1x128xf32>
    %cst_19 = arith.constant 0.001953125 : f32
    %32 = vector.broadcast %cst_19 : f32 to vector<1x128xf32>
    %33 = arith.mulf %31, %32 : vector<1x128xf32>
    %34 = arith.mulf %19, %19 : vector<36x128xf32>
    %cst_20 = arith.constant dense<0.000000e+00> : vector<128xf32>
    %35 = vector.multi_reduction <add>, %34, %cst_20 [0] : vector<36x128xf32> to vector<128xf32>
    %36 = vector.shape_cast %35 : vector<128xf32> to vector<1x128xf32>
    %c4_i32_21 = arith.constant 4 : i32
    %37 = tpu.dynamic_rotate %36 by %c4_i32_21 dim 1 : vector<1x128xf32>, i32 -> vector<1x128xf32>
    %38 = arith.addf %36, %37 : vector<1x128xf32>
    %c8_i32_22 = arith.constant 8 : i32
    %39 = tpu.dynamic_rotate %38 by %c8_i32_22 dim 1 : vector<1x128xf32>, i32 -> vector<1x128xf32>
    %40 = arith.addf %38, %39 : vector<1x128xf32>
    %c16_i32_23 = arith.constant 16 : i32
    %41 = tpu.dynamic_rotate %40 by %c16_i32_23 dim 1 : vector<1x128xf32>, i32 -> vector<1x128xf32>
    %42 = arith.addf %40, %41 : vector<1x128xf32>
    %c32_i32_24 = arith.constant 32 : i32
    %43 = tpu.dynamic_rotate %42 by %c32_i32_24 dim 1 : vector<1x128xf32>, i32 -> vector<1x128xf32>
    %44 = arith.addf %42, %43 : vector<1x128xf32>
    %c64_i32_25 = arith.constant 64 : i32
    %45 = tpu.dynamic_rotate %44 by %c64_i32_25 dim 1 : vector<1x128xf32>, i32 -> vector<1x128xf32>
    %46 = arith.addf %44, %45 : vector<1x128xf32>
    %cst_26 = arith.constant 0.001953125 : f32
    %47 = vector.broadcast %cst_26 : f32 to vector<1x128xf32>
    %48 = arith.mulf %46, %47 : vector<1x128xf32>
    %49 = arith.mulf %33, %33 : vector<1x128xf32>
    %50 = arith.subf %48, %49 : vector<1x128xf32>
    %cst_27 = arith.constant 9.99999974E-6 : f32
    %51 = vector.broadcast %cst_27 : f32 to vector<1x128xf32>
    %52 = arith.addf %50, %51 : vector<1x128xf32>
    %53 = math.rsqrt %52 : vector<1x128xf32>
    %54 = arith.mulf %17, %53 : vector<1x128xf32>
    %55 = arith.mulf %33, %54 : vector<1x128xf32>
    %56 = arith.subf %18, %55 : vector<1x128xf32>
    %57 = vector.broadcast %54 : vector<1x128xf32> to vector<36x128xf32>
    %58 = arith.mulf %16, %57 : vector<36x128xf32>
    %59 = vector.broadcast %56 : vector<1x128xf32> to vector<36x128xf32>
    %60 = arith.addf %58, %59 : vector<36x128xf32>
    %cst_28 = arith.constant 0.000000e+00 : f32
    %61 = vector.broadcast %cst_28 : f32 to vector<36x128xf32>
    %62 = arith.maximumf %60, %61 : vector<36x128xf32>
    %63 = arith.mulf %62, %0 : vector<36x128xf32>
    %cst_29 = arith.constant 0.000000e+00 : f32
    %64 = vector.broadcast %cst_29 : f32 to vector<8x128xf32>
    %c0_30 = arith.constant 0 : index
    %c0_31 = arith.constant 0 : index
    %65 = vector.load %arg6[%c0_30, %c0_31] : memref<52x128xf32, #tpu.memory_space<vmem>>, vector<8x128xf32>
    tpu.vector_store %arg6[%c0_30, %c0_31], %64 {strides = array<i32>} : memref<52x128xf32, #tpu.memory_space<vmem>>, vector<8x128xf32>,
    %cst_32 = arith.constant 0.000000e+00 : f32
    %66 = vector.broadcast %cst_32 : f32 to vector<8x128xf32>
    %c44 = arith.constant 44 : index
    %c0_33 = arith.constant 0 : index
    %67 = vector.load %arg6[%c44, %c0_33] : memref<52x128xf32, #tpu.memory_space<vmem>>, vector<8x128xf32>
    tpu.vector_store %arg6[%c44, %c0_33], %66 {strides = array<i32>} : memref<52x128xf32, #tpu.memory_space<vmem>>, vector<8x128xf32>,
    %c8_34 = arith.constant 8 : index
    %c0_35 = arith.constant 0 : index
    %68 = vector.load %arg6[%c8_34, %c0_35] : memref<52x128xf32, #tpu.memory_space<vmem>>, vector<36x128xf32>
    tpu.vector_store %arg6[%c8_34, %c0_35], %63 {strides = array<i32>} : memref<52x128xf32, #tpu.memory_space<vmem>>, vector<36x128xf32>,
    %cst_36 = arith.constant 0.000000e+00 : f32
    %69 = vector.broadcast %cst_36 : f32 to vector<36x128xf32>
    %c7_37 = arith.constant 7 : index
    %c0_38 = arith.constant 0 : index
    %70 = vector.load %arg6[%c7_37, %c0_38] : memref<52x128xf32, #tpu.memory_space<vmem>>, vector<36x128xf32>
    %c0_39 = arith.constant 0 : index
    %c0_40 = arith.constant 0 : index
    %c0_41 = arith.constant 0 : index
    %71 = vector.load %arg3[%c0_39, %c0_40, %c0_41] : memref<3x128x128xf32, #tpu.memory_space<vmem>>, vector<1x128x128xf32>
    %72 = vector.shape_cast %71 : vector<1x128x128xf32> to vector<128x128xf32>
    %cst_42 = arith.constant dense<0.000000e+00> : vector<36x128xf32>
    %73 = tpu.matmul %70, %72, %cst_42 {dimension_numbers = #tpu.dot_dimension_numbers<[1], [0], [0], [1], [0, 0, 1, 1], [], []>} : vector<36x128xf32>, vector<128x128xf32>, vector<36x128xf32> -> vector<36x128xf32>
    %74 = arith.addf %69, %73 : vector<36x128xf32>
    %c8_43 = arith.constant 8 : index
    %c0_44 = arith.constant 0 : index
    %75 = vector.load %arg6[%c8_43, %c0_44] : memref<52x128xf32, #tpu.memory_space<vmem>>, vector<36x128xf32>
    %c1_45 = arith.constant 1 : index
    %c0_46 = arith.constant 0 : index
    %c0_47 = arith.constant 0 : index
    %76 = vector.load %arg3[%c1_45, %c0_46, %c0_47] : memref<3x128x128xf32, #tpu.memory_space<vmem>>, vector<1x128x128xf32>
    %77 = vector.shape_cast %76 : vector<1x128x128xf32> to vector<128x128xf32>
    %cst_48 = arith.constant dense<0.000000e+00> : vector<36x128xf32>
    %78 = tpu.matmul %75, %77, %cst_48 {dimension_numbers = #tpu.dot_dimension_numbers<[1], [0], [0], [1], [0, 0, 1, 1], [], []>} : vector<36x128xf32>, vector<128x128xf32>, vector<36x128xf32> -> vector<36x128xf32>
    %79 = arith.addf %74, %78 : vector<36x128xf32>
    %c9_49 = arith.constant 9 : index
    %c0_50 = arith.constant 0 : index
    %80 = vector.load %arg6[%c9_49, %c0_50] : memref<52x128xf32, #tpu.memory_space<vmem>>, vector<36x128xf32>
    %c2_51 = arith.constant 2 : index
    %c0_52 = arith.constant 0 : index
    %c0_53 = arith.constant 0 : index
    %81 = vector.load %arg3[%c2_51, %c0_52, %c0_53] : memref<3x128x128xf32, #tpu.memory_space<vmem>>, vector<1x128x128xf32>
    %82 = vector.shape_cast %81 : vector<1x128x128xf32> to vector<128x128xf32>
    %cst_54 = arith.constant dense<0.000000e+00> : vector<36x128xf32>
    %83 = tpu.matmul %80, %82, %cst_54 {dimension_numbers = #tpu.dot_dimension_numbers<[1], [0], [0], [1], [0, 0, 1, 1], [], []>} : vector<36x128xf32>, vector<128x128xf32>, vector<36x128xf32> -> vector<36x128xf32>
    %84 = arith.addf %79, %83 : vector<36x128xf32>
    %c2_55 = arith.constant 2 : index
    %c0_56 = arith.constant 0 : index
    %85 = vector.load %arg4[%c2_55, %c0_56] : memref<4x128xf32, #tpu.memory_space<vmem>>, vector<1x128xf32>
    %c3 = arith.constant 3 : index
    %c0_57 = arith.constant 0 : index
    %86 = vector.load %arg4[%c3, %c0_57] : memref<4x128xf32, #tpu.memory_space<vmem>>, vector<1x128xf32>
    %87 = arith.mulf %84, %0 : vector<36x128xf32>
    %cst_58 = arith.constant dense<0.000000e+00> : vector<128xf32>
    %88 = vector.multi_reduction <add>, %87, %cst_58 [0] : vector<36x128xf32> to vector<128xf32>
    %89 = vector.shape_cast %88 : vector<128xf32> to vector<1x128xf32>
    %c4_i32_59 = arith.constant 4 : i32
    %90 = tpu.dynamic_rotate %89 by %c4_i32_59 dim 1 : vector<1x128xf32>, i32 -> vector<1x128xf32>
    %91 = arith.addf %89, %90 : vector<1x128xf32>
    %c8_i32_60 = arith.constant 8 : i32
    %92 = tpu.dynamic_rotate %91 by %c8_i32_60 dim 1 : vector<1x128xf32>, i32 -> vector<1x128xf32>
    %93 = arith.addf %91, %92 : vector<1x128xf32>
    %c16_i32_61 = arith.constant 16 : i32
    %94 = tpu.dynamic_rotate %93 by %c16_i32_61 dim 1 : vector<1x128xf32>, i32 -> vector<1x128xf32>
    %95 = arith.addf %93, %94 : vector<1x128xf32>
    %c32_i32_62 = arith.constant 32 : i32
    %96 = tpu.dynamic_rotate %95 by %c32_i32_62 dim 1 : vector<1x128xf32>, i32 -> vector<1x128xf32>
    %97 = arith.addf %95, %96 : vector<1x128xf32>
    %c64_i32_63 = arith.constant 64 : i32
    %98 = tpu.dynamic_rotate %97 by %c64_i32_63 dim 1 : vector<1x128xf32>, i32 -> vector<1x128xf32>
    %99 = arith.addf %97, %98 : vector<1x128xf32>
    %cst_64 = arith.constant 0.001953125 : f32
    %100 = vector.broadcast %cst_64 : f32 to vector<1x128xf32>
    %101 = arith.mulf %99, %100 : vector<1x128xf32>
    %102 = arith.mulf %87, %87 : vector<36x128xf32>
    %cst_65 = arith.constant dense<0.000000e+00> : vector<128xf32>
    %103 = vector.multi_reduction <add>, %102, %cst_65 [0] : vector<36x128xf32> to vector<128xf32>
    %104 = vector.shape_cast %103 : vector<128xf32> to vector<1x128xf32>
    %c4_i32_66 = arith.constant 4 : i32
    %105 = tpu.dynamic_rotate %104 by %c4_i32_66 dim 1 : vector<1x128xf32>, i32 -> vector<1x128xf32>
    %106 = arith.addf %104, %105 : vector<1x128xf32>
    %c8_i32_67 = arith.constant 8 : i32
    %107 = tpu.dynamic_rotate %106 by %c8_i32_67 dim 1 : vector<1x128xf32>, i32 -> vector<1x128xf32>
    %108 = arith.addf %106, %107 : vector<1x128xf32>
    %c16_i32_68 = arith.constant 16 : i32
    %109 = tpu.dynamic_rotate %108 by %c16_i32_68 dim 1 : vector<1x128xf32>, i32 -> vector<1x128xf32>
    %110 = arith.addf %108, %109 : vector<1x128xf32>
    %c32_i32_69 = arith.constant 32 : i32
    %111 = tpu.dynamic_rotate %110 by %c32_i32_69 dim 1 : vector<1x128xf32>, i32 -> vector<1x128xf32>
    %112 = arith.addf %110, %111 : vector<1x128xf32>
    %c64_i32_70 = arith.constant 64 : i32
    %113 = tpu.dynamic_rotate %112 by %c64_i32_70 dim 1 : vector<1x128xf32>, i32 -> vector<1x128xf32>
    %114 = arith.addf %112, %113 : vector<1x128xf32>
    %cst_71 = arith.constant 0.001953125 : f32
    %115 = vector.broadcast %cst_71 : f32 to vector<1x128xf32>
    %116 = arith.mulf %114, %115 : vector<1x128xf32>
    %117 = arith.mulf %101, %101 : vector<1x128xf32>
    %118 = arith.subf %116, %117 : vector<1x128xf32>
    %cst_72 = arith.constant 9.99999974E-6 : f32
    %119 = vector.broadcast %cst_72 : f32 to vector<1x128xf32>
    %120 = arith.addf %118, %119 : vector<1x128xf32>
    %121 = math.rsqrt %120 : vector<1x128xf32>
    %122 = arith.mulf %85, %121 : vector<1x128xf32>
    %123 = arith.mulf %101, %122 : vector<1x128xf32>
    %124 = arith.subf %86, %123 : vector<1x128xf32>
    %125 = vector.broadcast %122 : vector<1x128xf32> to vector<36x128xf32>
    %126 = arith.mulf %84, %125 : vector<36x128xf32>
    %127 = vector.broadcast %124 : vector<1x128xf32> to vector<36x128xf32>
    %128 = arith.addf %126, %127 : vector<36x128xf32>
    %c8_73 = arith.constant 8 : index
    %c0_74 = arith.constant 0 : index
    %129 = vector.load %arg0[%c8_73, %c0_74] : memref<52x128xf32, #tpu.memory_space<vmem>>, vector<36x128xf32>
    %130 = arith.addf %128, %129 : vector<36x128xf32>
    %cst_75 = arith.constant 0.000000e+00 : f32
    %131 = vector.broadcast %cst_75 : f32 to vector<36x128xf32>
    %132 = arith.maximumf %130, %131 : vector<36x128xf32>
    %c0_76 = arith.constant 0 : index
    %c0_77 = arith.constant 0 : index
    %133 = vector.load %arg5[%c0_76, %c0_77] : memref<36x128xf32, #tpu.memory_space<vmem>>, vector<36x128xf32>
    tpu.vector_store %arg5[%c0_76, %c0_77], %132 {strides = array<i32>} : memref<36x128xf32, #tpu.memory_space<vmem>>, vector<36x128xf32>,
    return
  }
}

</mosaic_0001>

<llo_original>
// kernel: tpu_custom_call.1
$region0: #{tpu_custom_call.1}
  #allocation0 [shape = 'u32[]', space=smem, size = 0x4, offset = 0x4, fixed_abs, tag = 'smem constant byte address 0x4 - core index']
  #allocation1 [shape = 'u32[72,128]{1,0:T(1,128)}', space=vmem, size = 0x9000, scoped, tag = 'internal scratch']
  #allocation2 [shape = 'f32[52,128]{1,0:T(8,128)}', space=vmem, size = 0x7000, scoped, tag = 'scratch operand']
  %s0 = inlined_call_operand.hbm [shape: f32[52,128], index: 0, kind: input, shape index: {}]
  %s1 = inlined_call_operand.hbm [shape: f32[36,128], index: 1, kind: input, shape index: {}]
  %s2 = inlined_call_operand.hbm [shape: f32[3,128,128], index: 2, kind: input, shape index: {}]
  %s3 = inlined_call_operand.hbm [shape: f32[3,128,128], index: 3, kind: input, shape index: {}]
  %s4 = inlined_call_operand.hbm [shape: f32[4,128], index: 4, kind: input, shape index: {}]
  %s5 = inlined_call_operand.hbm [shape: f32[36,128], index: 5, kind: output, shape index: {}]
  %s6 = sld [smem:[#allocation0]]
  $region50: #{tpu_custom_call.1} parent=0
    _
  %s8 = ssub.s32 1, %s6
  %s9 = scalar_select 0, %s8, %s6
  $region1: #{tpu_custom_call.1} parent=0
    #allocation3 [shape = 'u8[28672]{0}', space=vmem, size = 0x7000, scoped, tag = 'input window, operand 0, single buffered']
    #allocation4 [shape = 's32[1]{0}', space=sflag, size = 0x4, scoped, tag = 'scoped memory for tpu_custom_call.1']
    #allocation5 [shape = 's32[1]{0}', space=sflag, size = 0x4, scoped, tag = 'scoped memory for tpu_custom_call.1']
    #allocation6 [shape = 'u8[20480]{0}', space=vmem, size = 0x5000, scoped, tag = 'input window, operand 1, single buffered']
    #allocation7 [shape = 's32[1]{0}', space=sflag, size = 0x4, scoped, tag = 'scoped memory for tpu_custom_call.1']
    #allocation8 [shape = 'u8[196608]{0}', space=vmem, size = 0x30000, scoped, tag = 'input window, operand 2, single buffered']
    #allocation9 [shape = 'u8[196608]{0}', space=vmem, size = 0x30000, scoped, tag = 'input window, operand 3, single buffered']
    #allocation10 [shape = 's32[1]{0}', space=sflag, size = 0x4, scoped, tag = 'scoped memory for tpu_custom_call.1']
    #allocation11 [shape = 'u8[2048]{0}', space=vmem, size = 0x800, scoped, tag = 'input window, operand 4, single buffered']
    #allocation12 [shape = 'u8[20480]{0}', space=vmem, size = 0x5000, scoped, tag = 'output window, operand 0, single buffered']
    %10 = vsyncpa [#allocation4], 0
    %11 = vsyncpa [#allocation7], 0
    %12 = vsyncpa [#allocation10], 0
    %13 = vsyncpa [#allocation5], 0
    // Predicated region
    $region2: #{tpu_custom_call.1} parent=1 // pred_check
      _
    $region3: #{tpu_custom_call.1} parent=1 // pred_check_branch
      %15 = sbr.rel (0) target = $region5
    $region4: #{tpu_custom_call.1} parent=1 // pred_region
      %17 = vsyncadd [#allocation4], 0
      %s18 = sshll.u32 %s0, 4
      %s19 = int_to_ptr.hbm [resolvable:$true] %s18
      %s20 = sshll.u32 [#allocation3], 4
      %s21 = int_to_ptr.vmem [resolvable:$true] %s20
      %26 = dma.hbm_to_vmem [thread:$0]  %s19, 896, %s21, [#allocation4], 128, 128, 8
    $region5: #{tpu_custom_call.1} parent=1 // pred_fallthru
      _
    // Predicated region
    $region6: #{tpu_custom_call.1} parent=1 // pred_check
      _
    $region7: #{tpu_custom_call.1} parent=1 // pred_check_branch
      %28 = sbr.rel (0) target = $region9
    $region8: #{tpu_custom_call.1} parent=1 // pred_region
      %30 = vsyncadd [#allocation7], 0
      %s31 = sshll.u32 %s1, 4
      %s32 = int_to_ptr.hbm [resolvable:$true] %s31
      %s33 = sshll.u32 [#allocation6], 4
      %s34 = int_to_ptr.vmem [resolvable:$true] %s33
      %39 = dma.hbm_to_vmem [thread:$0]  %s32, 640, %s34, [#allocation7], 128, 128, 8
    $region9: #{tpu_custom_call.1} parent=1 // pred_fallthru
      _
    // Predicated region
    $region10: #{tpu_custom_call.1} parent=1 // pred_check
      _
    $region11: #{tpu_custom_call.1} parent=1 // pred_check_branch
      %41 = sbr.rel (0) target = $region13
    $region12: #{tpu_custom_call.1} parent=1 // pred_region
      %43 = vsyncadd [#allocation7], 0
      %s44 = sshll.u32 %s2, 4
      %s45 = int_to_ptr.hbm [resolvable:$true] %s44
      %s46 = sshll.u32 [#allocation8], 4
      %s47 = int_to_ptr.vmem [resolvable:$true] %s46
      %52 = dma.hbm_to_vmem [thread:$0]  %s45, 6144, %s47, [#allocation7], 128, 128, 8
    $region13: #{tpu_custom_call.1} parent=1 // pred_fallthru
      _
    // Predicated region
    $region14: #{tpu_custom_call.1} parent=1 // pred_check
      _
    $region15: #{tpu_custom_call.1} parent=1 // pred_check_branch
      %54 = sbr.rel (0) target = $region17
    $region16: #{tpu_custom_call.1} parent=1 // pred_region
      %56 = vsyncadd [#allocation10], 0
      %s57 = sshll.u32 %s3, 4
      %s58 = int_to_ptr.hbm [resolvable:$true] %s57
      %s59 = sshll.u32 [#allocation9], 4
      %s60 = int_to_ptr.vmem [resolvable:$true] %s59
      %65 = dma.hbm_to_vmem [thread:$0]  %s58, 6144, %s60, [#allocation10], 128, 128, 8
    $region17: #{tpu_custom_call.1} parent=1 // pred_fallthru
      _
    // Predicated region
    $region18: #{tpu_custom_call.1} parent=1 // pred_check
      _
    $region19: #{tpu_custom_call.1} parent=1 // pred_check_branch
      %67 = sbr.rel (0) target = $region21
    $region20: #{tpu_custom_call.1} parent=1 // pred_region
      %69 = vsyncadd [#allocation10], 0
      %s71 = sshll.u32 %s4, 4
      %s72 = int_to_ptr.hbm [resolvable:$true] %s71
      %s73 = sshll.u32 [#allocation11], 4
      %s74 = int_to_ptr.vmem [resolvable:$true] %s73
      %76 = dma.hbm_to_vmem [thread:$0]  %s72, 64, %s74, [#allocation10]
    $region21: #{tpu_custom_call.1} parent=1 // pred_fallthru
      _
    // Predicated region
    $region22: #{tpu_custom_call.1} parent=1 // pred_check
      _
    $region23: #{tpu_custom_call.1} parent=1 // pred_check_branch
      %78 = sbr.rel (0) target = $region25
    $region24: #{tpu_custom_call.1} parent=1 // pred_region
      %80 = dma.done [#allocation4], 896
    $region25: #{tpu_custom_call.1} parent=1 // pred_fallthru
      _
    // Predicated region
    $region26: #{tpu_custom_call.1} parent=1 // pred_check
      _
    $region27: #{tpu_custom_call.1} parent=1 // pred_check_branch
      %82 = sbr.rel (0) target = $region29
    $region28: #{tpu_custom_call.1} parent=1 // pred_region
      %84 = dma.done [#allocation7], 640
    $region29: #{tpu_custom_call.1} parent=1 // pred_fallthru
      _
    // Predicated region
    $region30: #{tpu_custom_call.1} parent=1 // pred_check
      _
    $region31: #{tpu_custom_call.1} parent=1 // pred_check_branch
      %86 = sbr.rel (0) target = $region33
    $region32: #{tpu_custom_call.1} parent=1 // pred_region
      %88 = dma.done [#allocation7], 6144
    $region33: #{tpu_custom_call.1} parent=1 // pred_fallthru
      _
    // Predicated region
    $region34: #{tpu_custom_call.1} parent=1 // pred_check
      _
    $region35: #{tpu_custom_call.1} parent=1 // pred_check_branch
      %90 = sbr.rel (0) target = $region37
    $region36: #{tpu_custom_call.1} parent=1 // pred_region
      %92 = dma.done [#allocation10], 6144
    $region37: #{tpu_custom_call.1} parent=1 // pred_fallthru
      _
    // Predicated region
    $region38: #{tpu_custom_call.1} parent=1 // pred_check
      _
    $region39: #{tpu_custom_call.1} parent=1 // pred_check_branch
      %94 = sbr.rel (0) target = $region41
    $region40: #{tpu_custom_call.1} parent=1 // pred_region
      %96 = dma.done [#allocation10], 64
    $region41: #{tpu_custom_call.1} parent=1 // pred_fallthru
      _
    %v97 = vld [vmem:[#allocation6] sm:$0xff]
    %v98 = vld [vmem:[#allocation6 + $0x8] sm:$0xff]
    %v99 = vld [vmem:[#allocation6 + $0x10] sm:$0xff]
    %v100 = vld [vmem:[#allocation6 + $0x18] sm:$0xff]
    %v101 = vld [vmem:[#allocation6 + $0x20] sm:$0xf]
    %v102 = vld [vmem:[#allocation3 + $0x7] sm:$0xff]
    %v103 = vld [vmem:[#allocation3 + $0xf] sm:$0xff]
    %v104 = vld [vmem:[#allocation3 + $0x17] sm:$0xff]
    %v105 = vld [vmem:[#allocation3 + $0x1f] sm:$0xff]
    %v106 = vld [vmem:[#allocation3 + $0x27] sm:$0xf]
    %v107 = vld [vmem:[#allocation8] sm:$0xff]
    %v108 = vld [vmem:[#allocation8 + $0x8] sm:$0xff]
    %v109 = vld [vmem:[#allocation8 + $0x10] sm:$0xff]
    %v110 = vld [vmem:[#allocation8 + $0x18] sm:$0xff]
    %v111 = vld [vmem:[#allocation8 + $0x20] sm:$0xff]
    %v112 = vld [vmem:[#allocation8 + $0x28] sm:$0xff]
    %v113 = vld [vmem:[#allocation8 + $0x30] sm:$0xff]
    %v114 = vld [vmem:[#allocation8 + $0x38] sm:$0xff]
    %v115 = vld [vmem:[#allocation8 + $0x40] sm:$0xff]
    %v116 = vld [vmem:[#allocation8 + $0x48] sm:$0xff]
    %v117 = vld [vmem:[#allocation8 + $0x50] sm:$0xff]
    %v118 = vld [vmem:[#allocation8 + $0x58] sm:$0xff]
    %v119 = vld [vmem:[#allocation8 + $0x60] sm:$0xff]
    %v120 = vld [vmem:[#allocation8 + $0x68] sm:$0xff]
    %v121 = vld [vmem:[#allocation8 + $0x70] sm:$0xff]
    %v122 = vld [vmem:[#allocation8 + $0x78] sm:$0xff]
    %v123 = vld [vmem:[#allocation3 + $0x8] sm:$0xff]
    %v124 = vld [vmem:[#allocation3 + $0x10] sm:$0xff]
    %v125 = vld [vmem:[#allocation3 + $0x18] sm:$0xff]
    %v126 = vld [vmem:[#allocation3 + $0x20] sm:$0xff]
    %v127 = vld [vmem:[#allocation3 + $0x28] sm:$0xf]
    %s128 = scalar_lea.vmem [#allocation8], 128
    %v129 = vld [vmem:[%s128] sm:$0xff]
    %v130 = vld [vmem:[%s128 + $0x8] sm:$0xff]
    %v131 = vld [vmem:[%s128 + $0x10] sm:$0xff]
    %v132 = vld [vmem:[%s128 + $0x18] sm:$0xff]
    %v133 = vld [vmem:[%s128 + $0x20] sm:$0xff]
    %v134 = vld [vmem:[%s128 + $0x28] sm:$0xff]
    %v135 = vld [vmem:[%s128 + $0x30] sm:$0xff]
    %v136 = vld [vmem:[%s128 + $0x38] sm:$0xff]
    %v137 = vld [vmem:[%s128 + $0x40] sm:$0xff]
    %v138 = vld [vmem:[%s128 + $0x48] sm:$0xff]
    %v139 = vld [vmem:[%s128 + $0x50] sm:$0xff]
    %v140 = vld [vmem:[%s128 + $0x58] sm:$0xff]
    %v141 = vld [vmem:[%s128 + $0x60] sm:$0xff]
    %v142 = vld [vmem:[%s128 + $0x68] sm:$0xff]
    %v143 = vld [vmem:[%s128 + $0x70] sm:$0xff]
    %v144 = vld [vmem:[%s128 + $0x78] sm:$0xff]
    %145 = vmatpush.msra.mxu0 %v144
    %146 = vmatpush.msra.mxu0 %v143
    %147 = vmatpush.msra.mxu0 %v142
    %148 = vmatpush.msra.mxu0 %v141
    %149 = vmatpush.msra.mxu0 %v140
    %150 = vmatpush.msra.mxu0 %v139
    %151 = vmatpush.msra.mxu0 %v138
    %152 = vmatpush.msra.mxu0 %v137
    %153 = vmatpush.msra.mxu0 %v136
    %154 = vmatpush.msra.mxu0 %v135
    %155 = vmatpush.msra.mxu0 %v134
    %156 = vmatpush.msra.mxu0 %v133
    %157 = vmatpush.msra.mxu0 %v132
    %158 = vmatpush.msra.mxu0 %v131
    %159 = vmatpush.msra.mxu0 %v130
    %160 = vmatpush.msra.mxu0 %v129
    %161 = vmatmul.f32.gmra.mxu0 %v123
    %v162 = vpop.f32.mrf.mxu0
    %v163 = vadd.f32 0.0, %v162
    %164 = vmatmul.f32.gmra.mxu0 %v124
    %v165 = vpop.f32.mrf.mxu0
    %v166 = vadd.f32 0.0, %v165
    %167 = vmatmul.f32.gmra.mxu0 %v125
    %v168 = vpop.f32.mrf.mxu0
    %v169 = vadd.f32 0.0, %v168
    %170 = vmatmul.f32.gmra.mxu0 %v126
    %v171 = vpop.f32.mrf.mxu0
    %v172 = vadd.f32 0.0, %v171
    %173 = vmatmul.f32.gmra.mxu0 %v127
    %v174 = vpop.f32.mrf.mxu0
    %v175 = vadd.f32 0.0, %v174
    %176 = vdwg.mxu0
    %177 = vmatpush.msra.mxu0 %v122
    %178 = vmatpush.msra.mxu0 %v121
    %179 = vmatpush.msra.mxu0 %v120
    %180 = vmatpush.msra.mxu0 %v119
    %181 = vmatpush.msra.mxu0 %v118
    %182 = vmatpush.msra.mxu0 %v117
    %183 = vmatpush.msra.mxu0 %v116
    %184 = vmatpush.msra.mxu0 %v115
    %185 = vmatpush.msra.mxu0 %v114
    %186 = vmatpush.msra.mxu0 %v113
    %187 = vmatpush.msra.mxu0 %v112
    %188 = vmatpush.msra.mxu0 %v111
    %189 = vmatpush.msra.mxu0 %v110
    %190 = vmatpush.msra.mxu0 %v109
    %191 = vmatpush.msra.mxu0 %v108
    %192 = vmatpush.msra.mxu0 %v107
    %193 = vmatmul.f32.gmra.mxu0 %v102
    %v194 = vpop.f32.mrf.mxu0
    %v195 = vadd.f32 %v163, %v194
    %196 = vmatmul.f32.gmra.mxu0 %v103
    %v197 = vpop.f32.mrf.mxu0
    %v198 = vadd.f32 %v166, %v197
    %199 = vmatmul.f32.gmra.mxu0 %v104
    %v200 = vpop.f32.mrf.mxu0
    %v201 = vadd.f32 %v169, %v200
    %202 = vmatmul.f32.gmra.mxu0 %v105
    %v203 = vpop.f32.mrf.mxu0
    %v204 = vadd.f32 %v172, %v203
    %205 = vmatmul.f32.gmra.mxu0 %v106
    %v206 = vpop.f32.mrf.mxu0
    %v207 = vadd.f32 %v175, %v206
    %208 = vdwg.mxu0
    %v209 = vld [vmem:[#allocation3 + $0x9] sm:$0xff]
    %v210 = vld [vmem:[#allocation3 + $0x11] sm:$0xff]
    %v211 = vld [vmem:[#allocation3 + $0x19] sm:$0xff]
    %v212 = vld [vmem:[#allocation3 + $0x21] sm:$0xff]
    %v213 = vld [vmem:[#allocation3 + $0x29] sm:$0xf]
    %s214 = scalar_lea.vmem [#allocation8], 256
    %v215 = vld [vmem:[%s214] sm:$0xff]
    %v216 = vld [vmem:[%s214 + $0x8] sm:$0xff]
    %v217 = vld [vmem:[%s214 + $0x10] sm:$0xff]
    %v218 = vld [vmem:[%s214 + $0x18] sm:$0xff]
    %v219 = vld [vmem:[%s214 + $0x20] sm:$0xff]
    %v220 = vld [vmem:[%s214 + $0x28] sm:$0xff]
    %v221 = vld [vmem:[%s214 + $0x30] sm:$0xff]
    %v222 = vld [vmem:[%s214 + $0x38] sm:$0xff]
    %v223 = vld [vmem:[%s214 + $0x40] sm:$0xff]
    %v224 = vld [vmem:[%s214 + $0x48] sm:$0xff]
    %v225 = vld [vmem:[%s214 + $0x50] sm:$0xff]
    %v226 = vld [vmem:[%s214 + $0x58] sm:$0xff]
    %v227 = vld [vmem:[%s214 + $0x60] sm:$0xff]
    %v228 = vld [vmem:[%s214 + $0x68] sm:$0xff]
    %v229 = vld [vmem:[%s214 + $0x70] sm:$0xff]
    %v230 = vld [vmem:[%s214 + $0x78] sm:$0xff]
    %231 = vmatpush.msra.mxu0 %v230
    %232 = vmatpush.msra.mxu0 %v229
    %233 = vmatpush.msra.mxu0 %v228
    %234 = vmatpush.msra.mxu0 %v227
    %235 = vmatpush.msra.mxu0 %v226
    %236 = vmatpush.msra.mxu0 %v225
    %237 = vmatpush.msra.mxu0 %v224
    %238 = vmatpush.msra.mxu0 %v223
    %239 = vmatpush.msra.mxu0 %v222
    %240 = vmatpush.msra.mxu0 %v221
    %241 = vmatpush.msra.mxu0 %v220
    %242 = vmatpush.msra.mxu0 %v219
    %243 = vmatpush.msra.mxu0 %v218
    %244 = vmatpush.msra.mxu0 %v217
    %245 = vmatpush.msra.mxu0 %v216
    %246 = vmatpush.msra.mxu0 %v215
    %247 = vmatmul.f32.gmra.mxu0 %v209
    %v248 = vpop.f32.mrf.mxu0
    %v249 = vadd.f32 0.0, %v248
    %250 = vmatmul.f32.gmra.mxu0 %v210
    %v251 = vpop.f32.mrf.mxu0
    %v252 = vadd.f32 0.0, %v251
    %253 = vmatmul.f32.gmra.mxu0 %v211
    %v254 = vpop.f32.mrf.mxu0
    %v255 = vadd.f32 0.0, %v254
    %256 = vmatmul.f32.gmra.mxu0 %v212
    %v257 = vpop.f32.mrf.mxu0
    %v258 = vadd.f32 0.0, %v257
    %259 = vmatmul.f32.gmra.mxu0 %v213
    %v260 = vpop.f32.mrf.mxu0
    %v261 = vadd.f32 0.0, %v260
    %262 = vdwg.mxu0
    %v263 = vadd.f32 %v195, %v249
    %v264 = vadd.f32 %v198, %v252
    %v265 = vadd.f32 %v201, %v255
    %v266 = vadd.f32 %v204, %v258
    %v267 = vadd.f32 %v207, %v261
    %v268 = vld [vmem:[#allocation11] sm:$0x1]
    %v269 = vld [vmem:[#allocation11 + $0x1] sm:$0x1]
    %v270 = vmul.f32 %v263, %v97
    %v271 = vmul.f32 %v264, %v98
    %v272 = vmul.f32 %v265, %v99
    %v273 = vmul.f32 %v266, %v100
    %v274 = vmul.f32 %v267, %v101
    %v275 = vadd.f32 %v270, %v271
    %v276 = vadd.f32 %v275, %v272
    %v277 = vadd.f32 %v276, %v273
    %vm278 = vcmask 1043456
    %v279 = vsel %vm278, %v274, 0.0
    %v280 = vadd.f32 %v277, %v279
    %v281 = vrot.slane %v280, 4
    %v282 = vadd.f32 %v280, %v281
    %v283 = vrot.slane %v282, 2
    %v284 = vadd.f32 %v282, %v283
    %v285 = vrot.slane %v284, 1
    %v286 = vadd.f32 %v284, %v285
    %287 = vrot.lane.b32.xlu0 %v286, 4
    %v288 = vpop.permute.xlu0 %287
    %v289 = vadd.f32 %v286, %v288
    %290 = vrot.lane.b32.xlu0 %v289, 8
    %v291 = vpop.permute.xlu0 %290
    %v292 = vadd.f32 %v289, %v291
    %293 = vrot.lane.b32.xlu0 %v292, 16
    %v294 = vpop.permute.xlu0 %293
    %v295 = vadd.f32 %v292, %v294
    %296 = vrot.lane.b32.xlu0 %v295, 32
    %v297 = vpop.permute.xlu0 %296
    %v298 = vadd.f32 %v295, %v297
    %299 = vrot.lane.b32.xlu0 %v298, 64
    %v300 = vpop.permute.xlu0 %299
    %v301 = vadd.f32 %v298, %v300
    %v302 = vmul.f32 %v301, 0.001953125
    %v303 = vmul.f32 %v270, %v270
    %v304 = vmul.f32 %v271, %v271
    %v305 = vmul.f32 %v272, %v272
    %v306 = vmul.f32 %v273, %v273
    %v307 = vmul.f32 %v274, %v274
    %v308 = vadd.f32 %v303, %v304
    %v309 = vadd.f32 %v308, %v305
    %v310 = vadd.f32 %v309, %v306
    %v311 = vsel %vm278, %v307, 0.0
    %v312 = vadd.f32 %v310, %v311
    %v313 = vrot.slane %v312, 4
    %v314 = vadd.f32 %v312, %v313
    %v315 = vrot.slane %v314, 2
    %v316 = vadd.f32 %v314, %v315
    %v317 = vrot.slane %v316, 1
    %v318 = vadd.f32 %v316, %v317
    %319 = vrot.lane.b32.xlu0 %v318, 4
    %v320 = vpop.permute.xlu0 %319
    %v321 = vadd.f32 %v318, %v320
    %322 = vrot.lane.b32.xlu0 %v321, 8
    %v323 = vpop.permute.xlu0 %322
    %v324 = vadd.f32 %v321, %v323
    %325 = vrot.lane.b32.xlu0 %v324, 16
    %v326 = vpop.permute.xlu0 %325
    %v327 = vadd.f32 %v324, %v326
    %328 = vrot.lane.b32.xlu0 %v327, 32
    %v329 = vpop.permute.xlu0 %328
    %v330 = vadd.f32 %v327, %v329
    %331 = vrot.lane.b32.xlu0 %v330, 64
    %v332 = vpop.permute.xlu0 %331
    %v333 = vadd.f32 %v330, %v332
    %v334 = vmul.f32 %v333, 0.001953125
    %v335 = vmul.f32 %v302, %v302
    %v336 = vsub.f32 %v334, %v335
    %v337 = vadd.f32 %v336, 1e-05
    %v338 = vrsqrt.pop %v337
    %v339 = vmul.f32 %v338, %v337
    %v340 = vmul.f32 %v339, %v338
    %v341 = vmul.f32 0.5, %v340
    %v342 = vsub.f32 1.5, %v341
    %v343 = vmul.f32 %v338, %v342
    %vm344 = vweird.f32 %v337
    %vm345 = vweird.f32 %v338
    %vm346 = vmor %vm344, %vm345
    %v347 = vsel %vm346, %v338, %v343
    %v348 = vmul.f32 %v268, %v347
    %v349 = vmul.f32 %v302, %v348
    %v350 = vsub.f32 %v269, %v349
    %v351 = vperm.slane %v348, 0
    %v352 = vmul.f32 %v263, %v351
    %v353 = vmul.f32 %v264, %v351
    %v354 = vmul.f32 %v265, %v351
    %v355 = vmul.f32 %v266, %v351
    %v356 = vmul.f32 %v267, %v351
    %v357 = vperm.slane %v350, 0
    %v358 = vadd.f32 %v352, %v357
    %v359 = vadd.f32 %v353, %v357
    %v360 = vadd.f32 %v354, %v357
    %v361 = vadd.f32 %v355, %v357
    %v362 = vadd.f32 %v356, %v357
    %v363 = vmax.f32 %v358, 0.0
    %v364 = vmax.f32 %v359, 0.0
    %v365 = vmax.f32 %v360, 0.0
    %v366 = vmax.f32 %v361, 0.0
    %v367 = vmax.f32 %v362, 0.0
    %v368 = vmul.f32 %v363, %v97
    %v369 = vmul.f32 %v364, %v98
    %v370 = vmul.f32 %v365, %v99
    %v371 = vmul.f32 %v366, %v100
    %v372 = vmul.f32 %v367, %v101
    %373 = vst [vmem:[#allocation2] sm:$0xff] 0.0
    %374 = vst [vmem:[#allocation2 + $0x2c] sm:$0xff] 0.0
    %375 = vst [vmem:[#allocation2 + $0x8] sm:$0xff] %v368
    %376 = vst [vmem:[#allocation2 + $0x10] sm:$0xff] %v369
    %377 = vst [vmem:[#allocation2 + $0x18] sm:$0xff] %v370
    %378 = vst [vmem:[#allocation2 + $0x20] sm:$0xff] %v371
    %379 = vst [vmem:[#allocation2 + $0x28] sm:$0xf] %v372
    %v380 = vld [vmem:[#allocation2 + $0x7] sm:$0xff]
    %v381 = vld [vmem:[#allocation2 + $0xf] sm:$0xff]
    %v382 = vld [vmem:[#allocation2 + $0x17] sm:$0xff]
    %v383 = vld [vmem:[#allocation2 + $0x1f] sm:$0xff]
    %v384 = vld [vmem:[#allocation2 + $0x27] sm:$0xf]
    %v385 = vld [vmem:[#allocation9] sm:$0xff]
    %v386 = vld [vmem:[#allocation9 + $0x8] sm:$0xff]
    %v387 = vld [vmem:[#allocation9 + $0x10] sm:$0xff]
    %v388 = vld [vmem:[#allocation9 + $0x18] sm:$0xff]
    %v389 = vld [vmem:[#allocation9 + $0x20] sm:$0xff]
    %v390 = vld [vmem:[#allocation9 + $0x28] sm:$0xff]
    %v391 = vld [vmem:[#allocation9 + $0x30] sm:$0xff]
    %v392 = vld [vmem:[#allocation9 + $0x38] sm:$0xff]
    %v393 = vld [vmem:[#allocation9 + $0x40] sm:$0xff]
    %v394 = vld [vmem:[#allocation9 + $0x48] sm:$0xff]
    %v395 = vld [vmem:[#allocation9 + $0x50] sm:$0xff]
    %v396 = vld [vmem:[#allocation9 + $0x58] sm:$0xff]
    %v397 = vld [vmem:[#allocation9 + $0x60] sm:$0xff]
    %v398 = vld [vmem:[#allocation9 + $0x68] sm:$0xff]
    %v399 = vld [vmem:[#allocation9 + $0x70] sm:$0xff]
    %v400 = vld [vmem:[#allocation9 + $0x78] sm:$0xff]
    %v401 = vld [vmem:[#allocation2 + $0x8] sm:$0xff]
    %v402 = vld [vmem:[#allocation2 + $0x10] sm:$0xff]
    %v403 = vld [vmem:[#allocation2 + $0x18] sm:$0xff]
    %v404 = vld [vmem:[#allocation2 + $0x20] sm:$0xff]
    %v405 = vld [vmem:[#allocation2 + $0x28] sm:$0xf]
    %s406 = scalar_lea.vmem [#allocation9], 128
    %v407 = vld [vmem:[%s406] sm:$0xff]
    %v408 = vld [vmem:[%s406 + $0x8] sm:$0xff]
    %v409 = vld [vmem:[%s406 + $0x10] sm:$0xff]
    %v410 = vld [vmem:[%s406 + $0x18] sm:$0xff]
    %v411 = vld [vmem:[%s406 + $0x20] sm:$0xff]
    %v412 = vld [vmem:[%s406 + $0x28] sm:$0xff]
    %v413 = vld [vmem:[%s406 + $0x30] sm:$0xff]
    %v414 = vld [vmem:[%s406 + $0x38] sm:$0xff]
    %v415 = vld [vmem:[%s406 + $0x40] sm:$0xff]
    %v416 = vld [vmem:[%s406 + $0x48] sm:$0xff]
    %v417 = vld [vmem:[%s406 + $0x50] sm:$0xff]
    %v418 = vld [vmem:[%s406 + $0x58] sm:$0xff]
    %v419 = vld [vmem:[%s406 + $0x60] sm:$0xff]
    %v420 = vld [vmem:[%s406 + $0x68] sm:$0xff]
    %v421 = vld [vmem:[%s406 + $0x70] sm:$0xff]
    %v422 = vld [vmem:[%s406 + $0x78] sm:$0xff]
    %423 = vmatpush.msra.mxu0 %v422
    %424 = vmatpush.msra.mxu0 %v421
    %425 = vmatpush.msra.mxu0 %v420
    %426 = vmatpush.msra.mxu0 %v419
    %427 = vmatpush.msra.mxu0 %v418
    %428 = vmatpush.msra.mxu0 %v417
    %429 = vmatpush.msra.mxu0 %v416
    %430 = vmatpush.msra.mxu0 %v415
    %431 = vmatpush.msra.mxu0 %v414
    %432 = vmatpush.msra.mxu0 %v413
    %433 = vmatpush.msra.mxu0 %v412
    %434 = vmatpush.msra.mxu0 %v411
    %435 = vmatpush.msra.mxu0 %v410
    %436 = vmatpush.msra.mxu0 %v409
    %437 = vmatpush.msra.mxu0 %v408
    %438 = vmatpush.msra.mxu0 %v407
    %439 = vmatmul.f32.gmra.mxu0 %v401
    %v440 = vpop.f32.mrf.mxu0
    %v441 = vadd.f32 0.0, %v440
    %442 = vmatmul.f32.gmra.mxu0 %v402
    %v443 = vpop.f32.mrf.mxu0
    %v444 = vadd.f32 0.0, %v443
    %445 = vmatmul.f32.gmra.mxu0 %v403
    %v446 = vpop.f32.mrf.mxu0
    %v447 = vadd.f32 0.0, %v446
    %448 = vmatmul.f32.gmra.mxu0 %v404
    %v449 = vpop.f32.mrf.mxu0
    %v450 = vadd.f32 0.0, %v449
    %451 = vmatmul.f32.gmra.mxu0 %v405
    %v452 = vpop.f32.mrf.mxu0
    %v453 = vadd.f32 0.0, %v452
    %454 = vdwg.mxu0
    %455 = vmatpush.msra.mxu0 %v400
    %456 = vmatpush.msra.mxu0 %v399
    %457 = vmatpush.msra.mxu0 %v398
    %458 = vmatpush.msra.mxu0 %v397
    %459 = vmatpush.msra.mxu0 %v396
    %460 = vmatpush.msra.mxu0 %v395
    %461 = vmatpush.msra.mxu0 %v394
    %462 = vmatpush.msra.mxu0 %v393
    %463 = vmatpush.msra.mxu0 %v392
    %464 = vmatpush.msra.mxu0 %v391
    %465 = vmatpush.msra.mxu0 %v390
    %466 = vmatpush.msra.mxu0 %v389
    %467 = vmatpush.msra.mxu0 %v388
    %468 = vmatpush.msra.mxu0 %v387
    %469 = vmatpush.msra.mxu0 %v386
    %470 = vmatpush.msra.mxu0 %v385
    %471 = vmatmul.f32.gmra.mxu0 %v380
    %v472 = vpop.f32.mrf.mxu0
    %v473 = vadd.f32 %v441, %v472
    %474 = vmatmul.f32.gmra.mxu0 %v381
    %v475 = vpop.f32.mrf.mxu0
    %v476 = vadd.f32 %v444, %v475
    %477 = vmatmul.f32.gmra.mxu0 %v382
    %v478 = vpop.f32.mrf.mxu0
    %v479 = vadd.f32 %v447, %v478
    %480 = vmatmul.f32.gmra.mxu0 %v383
    %v481 = vpop.f32.mrf.mxu0
    %v482 = vadd.f32 %v450, %v481
    %483 = vmatmul.f32.gmra.mxu0 %v384
    %v484 = vpop.f32.mrf.mxu0
    %v485 = vadd.f32 %v453, %v484
    %486 = vdwg.mxu0
    %v487 = vld [vmem:[#allocation2 + $0x9] sm:$0xff]
    %v488 = vld [vmem:[#allocation2 + $0x11] sm:$0xff]
    %v489 = vld [vmem:[#allocation2 + $0x19] sm:$0xff]
    %v490 = vld [vmem:[#allocation2 + $0x21] sm:$0xff]
    %v491 = vld [vmem:[#allocation2 + $0x29] sm:$0xf]
    %s492 = scalar_lea.vmem [#allocation9], 256
    %v493 = vld [vmem:[%s492] sm:$0xff]
    %v494 = vld [vmem:[%s492 + $0x8] sm:$0xff]
    %v495 = vld [vmem:[%s492 + $0x10] sm:$0xff]
    %v496 = vld [vmem:[%s492 + $0x18] sm:$0xff]
    %v497 = vld [vmem:[%s492 + $0x20] sm:$0xff]
    %v498 = vld [vmem:[%s492 + $0x28] sm:$0xff]
    %v499 = vld [vmem:[%s492 + $0x30] sm:$0xff]
    %v500 = vld [vmem:[%s492 + $0x38] sm:$0xff]
    %v501 = vld [vmem:[%s492 + $0x40] sm:$0xff]
    %v502 = vld [vmem:[%s492 + $0x48] sm:$0xff]
    %v503 = vld [vmem:[%s492 + $0x50] sm:$0xff]
    %v504 = vld [vmem:[%s492 + $0x58] sm:$0xff]
    %v505 = vld [vmem:[%s492 + $0x60] sm:$0xff]
    %v506 = vld [vmem:[%s492 + $0x68] sm:$0xff]
    %v507 = vld [vmem:[%s492 + $0x70] sm:$0xff]
    %v508 = vld [vmem:[%s492 + $0x78] sm:$0xff]
    %509 = vmatpush.msra.mxu0 %v508
    %510 = vmatpush.msra.mxu0 %v507
    %511 = vmatpush.msra.mxu0 %v506
    %512 = vmatpush.msra.mxu0 %v505
    %513 = vmatpush.msra.mxu0 %v504
    %514 = vmatpush.msra.mxu0 %v503
    %515 = vmatpush.msra.mxu0 %v502
    %516 = vmatpush.msra.mxu0 %v501
    %517 = vmatpush.msra.mxu0 %v500
    %518 = vmatpush.msra.mxu0 %v499
    %519 = vmatpush.msra.mxu0 %v498
    %520 = vmatpush.msra.mxu0 %v497
    %521 = vmatpush.msra.mxu0 %v496
    %522 = vmatpush.msra.mxu0 %v495
    %523 = vmatpush.msra.mxu0 %v494
    %524 = vmatpush.msra.mxu0 %v493
    %525 = vmatmul.f32.gmra.mxu0 %v487
    %v526 = vpop.f32.mrf.mxu0
    %v527 = vadd.f32 0.0, %v526
    %528 = vmatmul.f32.gmra.mxu0 %v488
    %v529 = vpop.f32.mrf.mxu0
    %v530 = vadd.f32 0.0, %v529
    %531 = vmatmul.f32.gmra.mxu0 %v489
    %v532 = vpop.f32.mrf.mxu0
    %v533 = vadd.f32 0.0, %v532
    %534 = vmatmul.f32.gmra.mxu0 %v490
    %v535 = vpop.f32.mrf.mxu0
    %v536 = vadd.f32 0.0, %v535
    %537 = vmatmul.f32.gmra.mxu0 %v491
    %v538 = vpop.f32.mrf.mxu0
    %v539 = vadd.f32 0.0, %v538
    %540 = vdwg.mxu0
    %v541 = vadd.f32 %v473, %v527
    %v542 = vadd.f32 %v476, %v530
    %v543 = vadd.f32 %v479, %v533
    %v544 = vadd.f32 %v482, %v536
    %v545 = vadd.f32 %v485, %v539
    %v546 = vld [vmem:[#allocation11 + $0x2] sm:$0x1]
    %v547 = vld [vmem:[#allocation11 + $0x3] sm:$0x1]
    %v548 = vmul.f32 %v541, %v97
    %v549 = vmul.f32 %v542, %v98
    %v550 = vmul.f32 %v543, %v99
    %v551 = vmul.f32 %v544, %v100
    %v552 = vmul.f32 %v545, %v101
    %v553 = vadd.f32 %v548, %v549
    %v554 = vadd.f32 %v553, %v550
    %v555 = vadd.f32 %v554, %v551
    %v556 = vsel %vm278, %v552, 0.0
    %v557 = vadd.f32 %v555, %v556
    %v558 = vrot.slane %v557, 4
    %v559 = vadd.f32 %v557, %v558
    %v560 = vrot.slane %v559, 2
    %v561 = vadd.f32 %v559, %v560
    %v562 = vrot.slane %v561, 1
    %v563 = vadd.f32 %v561, %v562
    %564 = vrot.lane.b32.xlu0 %v563, 4
    %v565 = vpop.permute.xlu0 %564
    %v566 = vadd.f32 %v563, %v565
    %567 = vrot.lane.b32.xlu0 %v566, 8
    %v568 = vpop.permute.xlu0 %567
    %v569 = vadd.f32 %v566, %v568
    %570 = vrot.lane.b32.xlu0 %v569, 16
    %v571 = vpop.permute.xlu0 %570
    %v572 = vadd.f32 %v569, %v571
    %573 = vrot.lane.b32.xlu0 %v572, 32
    %v574 = vpop.permute.xlu0 %573
    %v575 = vadd.f32 %v572, %v574
    %576 = vrot.lane.b32.xlu0 %v575, 64
    %v577 = vpop.permute.xlu0 %576
    %v578 = vadd.f32 %v575, %v577
    %v579 = vmul.f32 %v578, 0.001953125
    %v580 = vmul.f32 %v548, %v548
    %v581 = vmul.f32 %v549, %v549
    %v582 = vmul.f32 %v550, %v550
    %v583 = vmul.f32 %v551, %v551
    %v584 = vmul.f32 %v552, %v552
    %v585 = vadd.f32 %v580, %v581
    %v586 = vadd.f32 %v585, %v582
    %v587 = vadd.f32 %v586, %v583
    %v588 = vsel %vm278, %v584, 0.0
    %v589 = vadd.f32 %v587, %v588
    %v590 = vrot.slane %v589, 4
    %v591 = vadd.f32 %v589, %v590
    %v592 = vrot.slane %v591, 2
    %v593 = vadd.f32 %v591, %v592
    %v594 = vrot.slane %v593, 1
    %v595 = vadd.f32 %v593, %v594
    %596 = vrot.lane.b32.xlu0 %v595, 4
    %v597 = vpop.permute.xlu0 %596
    %v598 = vadd.f32 %v595, %v597
    %599 = vrot.lane.b32.xlu0 %v598, 8
    %v600 = vpop.permute.xlu0 %599
    %v601 = vadd.f32 %v598, %v600
    %602 = vrot.lane.b32.xlu0 %v601, 16
    %v603 = vpop.permute.xlu0 %602
    %v604 = vadd.f32 %v601, %v603
    %605 = vrot.lane.b32.xlu0 %v604, 32
    %v606 = vpop.permute.xlu0 %605
    %v607 = vadd.f32 %v604, %v606
    %608 = vrot.lane.b32.xlu0 %v607, 64
    %v609 = vpop.permute.xlu0 %608
    %v610 = vadd.f32 %v607, %v609
    %v611 = vmul.f32 %v610, 0.001953125
    %v612 = vmul.f32 %v579, %v579
    %v613 = vsub.f32 %v611, %v612
    %v614 = vadd.f32 %v613, 1e-05
    %v615 = vrsqrt.pop %v614
    %v616 = vmul.f32 %v615, %v614
    %v617 = vmul.f32 %v616, %v615
    %v618 = vmul.f32 0.5, %v617
    %v619 = vsub.f32 1.5, %v618
    %v620 = vmul.f32 %v615, %v619
    %vm621 = vweird.f32 %v614
    %vm622 = vweird.f32 %v615
    %vm623 = vmor %vm621, %vm622
    %v624 = vsel %vm623, %v615, %v620
    %v625 = vmul.f32 %v546, %v624
    %v626 = vmul.f32 %v579, %v625
    %v627 = vsub.f32 %v547, %v626
    %v628 = vperm.slane %v625, 0
    %v629 = vmul.f32 %v541, %v628
    %v630 = vmul.f32 %v542, %v628
    %v631 = vmul.f32 %v543, %v628
    %v632 = vmul.f32 %v544, %v628
    %v633 = vmul.f32 %v545, %v628
    %v634 = vperm.slane %v627, 0
    %v635 = vadd.f32 %v629, %v634
    %v636 = vadd.f32 %v630, %v634
    %v637 = vadd.f32 %v631, %v634
    %v638 = vadd.f32 %v632, %v634
    %v639 = vadd.f32 %v633, %v634
    %v640 = vld [vmem:[#allocation3 + $0x8] sm:$0xff]
    %v641 = vld [vmem:[#allocation3 + $0x10] sm:$0xff]
    %v642 = vld [vmem:[#allocation3 + $0x18] sm:$0xff]
    %v643 = vld [vmem:[#allocation3 + $0x20] sm:$0xff]
    %v644 = vld [vmem:[#allocation3 + $0x28] sm:$0xf]
    %v645 = vadd.f32 %v635, %v640
    %v646 = vadd.f32 %v636, %v641
    %v647 = vadd.f32 %v637, %v642
    %v648 = vadd.f32 %v638, %v643
    %v649 = vadd.f32 %v639, %v644
    %v650 = vmax.f32 %v645, 0.0
    %v651 = vmax.f32 %v646, 0.0
    %v652 = vmax.f32 %v647, 0.0
    %v653 = vmax.f32 %v648, 0.0
    %v654 = vmax.f32 %v649, 0.0
    %655 = vst [vmem:[#allocation12] sm:$0xff] %v650
    %656 = vst [vmem:[#allocation12 + $0x8] sm:$0xff] %v651
    %657 = vst [vmem:[#allocation12 + $0x10] sm:$0xff] %v652
    %658 = vst [vmem:[#allocation12 + $0x18] sm:$0xff] %v653
    %659 = vst [vmem:[#allocation12 + $0x20] sm:$0xf] %v654
    // Predicated region
    $region42: #{tpu_custom_call.1} parent=1 // pred_check
      _
    $region43: #{tpu_custom_call.1} parent=1 // pred_check_branch
      %661 = sbr.rel (0) target = $region45
    $region44: #{tpu_custom_call.1} parent=1 // pred_region
      %663 = vsyncadd [#allocation5], 0
      %s664 = sshll.u32 [#allocation12], 4
      %s665 = int_to_ptr.vmem [resolvable:$true] %s664
      %s666 = sshll.u32 %s5, 4
      %s667 = int_to_ptr.hbm [resolvable:$true] %s666
      %672 = dma.vmem_to_hbm [thread:$0]  %s665, 640, %s667, [#allocation5], 128, 128, 8
    $region45: #{tpu_custom_call.1} parent=1 // pred_fallthru
      _
    // Predicated region
    $region46: #{tpu_custom_call.1} parent=1 // pred_check
      _
    $region47: #{tpu_custom_call.1} parent=1 // pred_check_branch
      %674 = sbr.rel (0) target = $region49
    $region48: #{tpu_custom_call.1} parent=1 // pred_region
      %676 = dma.done [#allocation5], 640
    $region49: #{tpu_custom_call.1} parent=1 // pred_fallthru
      _
    %677 = vsyncpa [#allocation4], 1
    %678 = vsyncpa [#allocation7], 1
    %679 = vsyncpa [#allocation10], 1
    %680 = vsyncpa [#allocation5], 1

</llo_original>
